<compile_context>
chip_gen: v7x
topology: tpu7x:2x2x1
jax: 0.10.0
libtpu: 0.0.40
codegen_flags: <defaults>
</compile_context>

<pallas_src>
import numpy as np
import jax
import jax.numpy as jnp
from jax.experimental import pallas as pl
from jax.experimental.pallas import tpu as pltpu


# ---------------- Module configuration (consistent with OutputHead) -----------
# irreps_in  = "32x0e + 16x1o"  -> feature dim = 32 + 16*3 = 80
# irreps_out = "1x1o"           -> 3 coords per residue
# residue_pad_length = 14       -> relative_coords_linear outputs 14x1o per residue
NUM_SCALARS = 32                                   # 0e multiplicity in irreps_in
NUM_VECTORS = 16                                   # 1o multiplicity in irreps_in
FEAT_DIM = NUM_SCALARS + 3 * NUM_VECTORS           # 80
RESIDUE_PAD_LENGTH = 14
L1_DIM = 3 * NUM_VECTORS                           # 48
BASE_DIM = 3                                       # 1x1o
REL_DIM = 3 * RESIDUE_PAD_LENGTH                   # 42


def _round_up(x: int, m: int) -> int:
    return ((x + m - 1) // m) * m


def init_params(key) -> dict:
    """Weights of the two e3nn o3.Linear layers + their expanded (transposed) forms.

    The expanded weights are [out_rows, FEAT_DIM] with zero columns for the 0e block
    (no 0e -> 1o path), so the kernel consumes the full native-dtype feature tile
    without any slicing, and the m-component block-diagonal structure is baked in:
        w_*_t[o*3+m, NUM_SCALARS + c*3 + k] = delta_{mk} * w[c, o] / sqrt(NUM_VECTORS)
    """
    k1, k2 = jax.random.split(key)
    w_base = jax.random.normal(k1, (NUM_VECTORS, 1), jnp.float32)                   # 16x1o -> 1x1o
    w_rel = jax.random.normal(k2, (NUM_VECTORS, RESIDUE_PAD_LENGTH), jnp.float32)   # 16x1o -> 14x1o
    scale = 1.0 / np.sqrt(NUM_VECTORS)                                              # e3nn path norm
    eye3 = jnp.eye(3, dtype=jnp.float32)

    # 1o block of the expanded weights (rows = output (o,m), cols = input (c,k)).
    w_base_1o = jnp.einsum("c,mk->mck", w_base[:, 0] * scale, eye3).reshape(BASE_DIM, L1_DIM)
    w_rel_1o = jnp.einsum("cq,mk->qmck", w_rel * scale, eye3).reshape(REL_DIM, L1_DIM)

    # Prepend zero columns for the 0e inputs.
    w_base_t = jnp.concatenate(
        [jnp.zeros((BASE_DIM, NUM_SCALARS), jnp.float32), w_base_1o], axis=1)       # [3, 80]
    w_rel_t = jnp.concatenate(
        [jnp.zeros((REL_DIM, NUM_SCALARS), jnp.float32), w_rel_1o], axis=1)         # [42, 80]
    return {"w_base": w_base, "w_rel": w_rel, "w_base_t": w_base_t, "w_rel_t": w_rel_t}


# ------------------------------- Pallas kernel --------------------------------
def _output_head_kernel(feat_ref, wb_ref, wr_ref, base_ref, rel_ref):
    """One node tile: both equivariant linears, node axis lane-dense in the outputs.

    out[o, n] = sum_f W[o, f] * feat[n, f]   (contract the feature axis of both)
    """
    f = feat_ref[...].astype(jnp.float32)          # native HBM dtype; cast in-register
    dn = (((1,), (1,)), ((), ()))                  # lhs dim 1 <.> rhs dim 1
    base_ref[...] = jax.lax.dot_general(
        wb_ref[...], f, dn, preferred_element_type=jnp.float32)
    rel_ref[...] = jax.lax.dot_general(
        wr_ref[...], f, dn, preferred_element_type=jnp.float32)


def _output_head_linears(features, w_base_t, w_rel_t, *, tile_n_max=4096):
    """features: [N, FEAT_DIM] (any float dtype) -> (base_t [3, N] f32, rel_t [42, N] f32)."""
    N, F = features.shape
    assert F == FEAT_DIM

    if N <= 128:
        tile_n = N                                  # single full-width block
    else:
        # Lane-dense tiles (multiples of 128); cap so the grid has >= 2 steps so the
        # "parallel" axis can shard across v7x's 2 TensorCores.
        tile_n = min(tile_n_max, _round_up(pl.cdiv(N, 2), 128))
        tile_n = max(128, (tile_n // 128) * 128)
    grid = (pl.cdiv(N, tile_n),)                    # ragged tail handled by the pipeline

    return pl.pallas_call(
        _output_head_kernel,
        out_shape=(
            jax.ShapeDtypeStruct((BASE_DIM, N), jnp.float32),
            jax.ShapeDtypeStruct((REL_DIM, N), jnp.float32),
        ),
        grid=grid,
        in_specs=[
            pl.BlockSpec((tile_n, FEAT_DIM), lambda i: (i, 0)),       # node tile, native dtype
            pl.BlockSpec((BASE_DIM, FEAT_DIM), lambda i: (0, 0)),     # tiny resident weight
            pl.BlockSpec((REL_DIM, FEAT_DIM), lambda i: (0, 0)),      # tiny resident weight
        ],
        out_specs=(
            pl.BlockSpec((BASE_DIM, tile_n), lambda i: (0, i)),       # lane-dense stores
            pl.BlockSpec((REL_DIM, tile_n), lambda i: (0, i)),
        ),
        compiler_params=pltpu.CompilerParams(
            dimension_semantics=("parallel",),
            vmem_limit_bytes=32 * 1024 * 1024,      # explicit; safe on v5e/v6e/v7x budgets
        ),
    )(features, w_base_t, w_rel_t)


# ------------------------------- Forward wrapper -------------------------------
def output_head_forward(features, residue_index, residue_index_atomwise, params,
                        *, tile_n_max=4096):
    """Returns (residue_base_coords [N,3], residue_relative_coords [num_atoms,3])."""
    N = features.shape[0]
    base_t, rel_t = _output_head_linears(
        features, params["w_base_t"], params["w_rel_t"], tile_n_max=tile_n_max)

    base_coords = base_t.T                                   # [N, 3] (12 B/node copy)

    # Un-pad: for each atom, gather its residue's padded row at its position within
    # the residue, directly from the lane-dense [42, N] kernel output.  The PyTorch
    # loop builds a dynamically-sized tensor; here the output length is static
    # (= residue_index_atomwise.shape[0]).
    # TODO(synk): assumes residue_index values equal the row index into `features`,
    # atoms are contiguous per residue in residue_index order, and no residue has
    # more than RESIDUE_PAD_LENGTH atoms (standard ResidueData layout); violations
    # silently produce wrong gathers.
    num_atoms = residue_index_atomwise.shape[0]
    ridx = residue_index_atomwise.astype(jnp.int32)
    counts = jnp.zeros((N,), jnp.int32).at[ridx].add(1)
    starts = jnp.cumsum(counts) - counts                     # exclusive cumsum
    pos = jnp.arange(num_atoms, dtype=jnp.int32) - starts[ridx]
    row_idx = pos[:, None] * 3 + jnp.arange(3, dtype=jnp.int32)[None, :]   # [A, 3]
    relative_coords = rel_t[row_idx, ridx[:, None]]          # [num_atoms, 3]

    return base_coords, relative_coords


# --------------------------------- Reference -----------------------------------
def reference_output_head(features, residue_index, residue_index_atomwise, params):
    """Pure NumPy mirror of the PyTorch forward (including the Python un-pad loop)."""
    feats = np.asarray(features, np.float64)
    w_base = np.asarray(params["w_base"], np.float64) / np.sqrt(NUM_VECTORS)
    w_rel = np.asarray(params["w_rel"], np.float64) / np.sqrt(NUM_VECTORS)

    x1 = feats[:, NUM_SCALARS:NUM_SCALARS + L1_DIM].reshape(-1, NUM_VECTORS, 3)
    base_coords = np.einsum("ncm,co->nom", x1, w_base).reshape(-1, 3)
    rel_padded = np.einsum("ncm,cp->npm", x1, w_rel)                     # [N, P, 3]

    ridx_atom = np.asarray(residue_index_atomwise)
    unpadded = []
    for idx in np.asarray(residue_index):
        n_atoms = int((ridx_atom == idx).sum())
        unpadded.append(rel_padded[idx, :n_atoms])
    relative_coords = np.concatenate(unpadded, axis=0)
    return base_coords, relative_coords


# ----------------------------------- Demo --------------------------------------
if __name__ == "__main__":
    key = jax.random.PRNGKey(0)
    k_feat1, k_feat2, k_params = jax.random.split(key, 3)
    params = init_params(k_params)

    def run_case(k_feat, n_res):
        features = jax.random.normal(k_feat, (n_res, FEAT_DIM), jnp.float32)
        residue_index = jnp.arange(n_res, dtype=jnp.int32)
        # Deterministic per-residue atom counts in [4, 14] (<= residue_pad_length).
        atom_counts = np.asarray([4 + (r % 11) for r in range(n_res)], np.int32)
        assert atom_counts.max() <= RESIDUE_PAD_LENGTH
        residue_index_atomwise = jnp.asarray(
            np.repeat(np.arange(n_res, dtype=np.int32), atom_counts))

        base_coords, relative_coords = output_head_forward(
            features, residue_index, residue_index_atomwise, params)
        base_coords = jax.block_until_ready(base_coords)
        relative_coords = jax.block_until_ready(relative_coords)

        ref_base, ref_rel = reference_output_head(
            features, residue_index, residue_index_atomwise, params)

        assert base_coords.shape == (n_res, 3)
        assert relative_coords.shape == (int(atom_counts.sum()), 3)
        # Tolerance covers the MXU's default (bf16-pass) f32 matmul precision; use
        # precision=Precision.HIGHEST in the kernel dot_general if tighter is needed.
        np.testing.assert_allclose(np.asarray(base_coords), ref_base, rtol=1e-2, atol=1e-2)
        np.testing.assert_allclose(np.asarray(relative_coords), ref_rel, rtol=1e-2, atol=1e-2)
        return base_coords, relative_coords, residue_index, residue_index_atomwise

    # Case 1: small, single full-width block.
    base_coords, relative_coords, residue_index, residue_index_atomwise = run_case(k_feat1, 42)
    # Case 2: multi-step grid with a ragged last tile (exercises cdiv-grid edge handling
    # and the >=2-step tile cap used for v7x megacore sharding).
    run_case(k_feat2, 300)

    # "Cloned" ResidueData with the two fields replaced (bookkeeping only).
    residue_data_out = {
        "residue_base_coords": base_coords,
        "residue_relative_coords": relative_coords,
        "residue_index": residue_index,
        "residue_index_atomwise": residue_index_atomwise,
    }

    print("KERNEL_OK")
</pallas_src>

<mosaic_0001>
module attributes {stable_mosaic.version = 11 : i64} {
  func.func @_output_head_kernel(%arg0: i32, %arg1: memref<42x80xf32, #tpu.memory_space<vmem>>, %arg2: memref<3x80xf32, #tpu.memory_space<vmem>>, %arg3: memref<42x80xf32, #tpu.memory_space<vmem>>, %arg4: memref<3x42xf32, #tpu.memory_space<vmem>>, %arg5: memref<42x42xf32, #tpu.memory_space<vmem>>) attributes {dimension_semantics = [#tpu.dimension_semantics<parallel>], iteration_bounds = array<i64: 1>, scalar_prefetch = 0 : i64, scratch_operands = 0 : i64, tpu.core_type = #tpu.core_type<tc>, window_params = [{transform_indices = @transform_0, window_bounds = array<i64: 42, 80>}, {pipeline_mode = #tpu.pipeline_mode<synchronous>, transform_indices = @transform_1, window_bounds = array<i64: 3, 80>}, {pipeline_mode = #tpu.pipeline_mode<synchronous>, transform_indices = @transform_2, window_bounds = array<i64: 42, 80>}, {transform_indices = @transform_3, window_bounds = array<i64: 3, 42>}, {transform_indices = @transform_4, window_bounds = array<i64: 42, 42>}]} {
    %c0 = arith.constant 0 : index
    %c0_0 = arith.constant 0 : index
    %0 = vector.load %arg1[%c0, %c0_0] : memref<42x80xf32, #tpu.memory_space<vmem>>, vector<42x80xf32>
    %c0_1 = arith.constant 0 : index
    %c0_2 = arith.constant 0 : index
    %1 = vector.load %arg2[%c0_1, %c0_2] : memref<3x80xf32, #tpu.memory_space<vmem>>, vector<3x80xf32>
    %cst = arith.constant dense<0.000000e+00> : vector<3x42xf32>
    %2 = tpu.matmul %1, %0, %cst {dimension_numbers = #tpu.dot_dimension_numbers<[1], [1], [0], [0], [0, 0, 1, 0], [], []>} : vector<3x80xf32>, vector<42x80xf32>, vector<3x42xf32> -> vector<3x42xf32>
    %c0_3 = arith.constant 0 : index
    %c0_4 = arith.constant 0 : index
    %3 = vector.load %arg4[%c0_3, %c0_4] : memref<3x42xf32, #tpu.memory_space<vmem>>, vector<3x42xf32>
    tpu.vector_store %arg4[%c0_3, %c0_4], %2 {strides = array<i32>} : memref<3x42xf32, #tpu.memory_space<vmem>>, vector<3x42xf32>,
    %c0_5 = arith.constant 0 : index
    %c0_6 = arith.constant 0 : index
    %4 = vector.load %arg3[%c0_5, %c0_6] : memref<42x80xf32, #tpu.memory_space<vmem>>, vector<42x80xf32>
    %cst_7 = arith.constant dense<0.000000e+00> : vector<42x42xf32>
    %5 = tpu.matmul %4, %0, %cst_7 {dimension_numbers = #tpu.dot_dimension_numbers<[1], [1], [0], [0], [0, 0, 1, 0], [], []>} : vector<42x80xf32>, vector<42x80xf32>, vector<42x42xf32> -> vector<42x42xf32>
    %c0_8 = arith.constant 0 : index
    %c0_9 = arith.constant 0 : index
    %6 = vector.load %arg5[%c0_8, %c0_9] : memref<42x42xf32, #tpu.memory_space<vmem>>, vector<42x42xf32>
    tpu.vector_store %arg5[%c0_8, %c0_9], %5 {strides = array<i32>} : memref<42x42xf32, #tpu.memory_space<vmem>>, vector<42x42xf32>,
    return
  }
  func.func @transform_0(%arg0: i32) -> (i32, i32) {
    %c0_i32 = arith.constant 0 : i32
    %c0_i32_0 = arith.constant 0 : i32
    return %arg0, %c0_i32 : i32, i32
  }
  func.func @transform_1(%arg0: i32) -> (i32, i32) {
    %c0_i32 = arith.constant 0 : i32
    %c0_i32_0 = arith.constant 0 : i32
    %c0_i32_1 = arith.constant 0 : i32
    return %c0_i32, %c0_i32_0 : i32, i32
  }
  func.func @transform_2(%arg0: i32) -> (i32, i32) {
    %c0_i32 = arith.constant 0 : i32
    %c0_i32_0 = arith.constant 0 : i32
    %c0_i32_1 = arith.constant 0 : i32
    return %c0_i32, %c0_i32_0 : i32, i32
  }
  func.func @transform_3(%arg0: i32) -> (i32, i32) {
    %c0_i32 = arith.constant 0 : i32
    %c0_i32_0 = arith.constant 0 : i32
    return %c0_i32, %arg0 : i32, i32
  }
  func.func @transform_4(%arg0: i32) -> (i32, i32) {
    %c0_i32 = arith.constant 0 : i32
    %c0_i32_0 = arith.constant 0 : i32
    return %c0_i32, %arg0 : i32, i32
  }
}

</mosaic_0001>

<llo_original>
// kernel: tpu_custom_call.1
$region0: #{tpu_custom_call.1}
  #allocation0 [shape = 'u32[]', space=smem, size = 0x4, offset = 0x4, fixed_abs, tag = 'smem constant byte address 0x4 - core index']
  #allocation1 [shape = 'u32[144,128]{1,0:T(1,128)}', space=vmem, size = 0x12000, scoped, tag = 'internal scratch']
  %s0 = inlined_call_operand.hbm [shape: f32[42,80], index: 0, kind: input, shape index: {}]
  %s1 = inlined_call_operand.hbm [shape: f32[3,80], index: 1, kind: input, shape index: {}]
  %s2 = inlined_call_operand.hbm [shape: f32[42,80], index: 2, kind: input, shape index: {}]
  %s3 = inlined_call_operand.hbm [shape: f32[3,42], index: 3, kind: output, shape index: {0}]
  %s4 = inlined_call_operand.hbm [shape: f32[42,42], index: 4, kind: output, shape index: {1}]
  %5 = xla_tuple %s3, %s4
  %s6 = sld [smem:[#allocation0]]
  $region42: #{tpu_custom_call.1} parent=0
    _
  %s8 = ssub.s32 1, %s6
  %s9 = scalar_select 0, %s8, %s6
  $region1: #{tpu_custom_call.1} parent=0
    #allocation2 [shape = 'u8[24576]{0}', space=vmem, size = 0x6000, scoped, tag = 'input window, operand 0, single buffered']
    #allocation3 [shape = 's32[1]{0}', space=sflag, size = 0x4, scoped, tag = 'scoped memory for tpu_custom_call.1']
    #allocation4 [shape = 's32[1]{0}', space=sflag, size = 0x4, scoped, tag = 'scoped memory for tpu_custom_call.1']
    #allocation5 [shape = 'u8[2048]{0}', space=vmem, size = 0x800, scoped, tag = 'input window, operand 1, single buffered']
    #allocation6 [shape = 's32[1]{0}', space=sflag, size = 0x4, scoped, tag = 'scoped memory for tpu_custom_call.1']
    #allocation7 [shape = 'u8[24576]{0}', space=vmem, size = 0x6000, scoped, tag = 'input window, operand 2, single buffered']
    #allocation8 [shape = 'u8[2048]{0}', space=vmem, size = 0x800, scoped, tag = 'output window, operand 0, single buffered']
    #allocation9 [shape = 'u8[24576]{0}', space=vmem, size = 0x6000, scoped, tag = 'output window, operand 1, single buffered']
    #allocation10 [shape = 's32[1]{0}', space=sflag, size = 0x4, scoped, tag = 'scoped memory for tpu_custom_call.1']
    %10 = vsyncpa [#allocation3], 0
    %11 = vsyncpa [#allocation6], 0
    %12 = vsyncpa [#allocation4], 0
    %13 = vsyncpa [#allocation10], 0
    // Predicated region
    $region2: #{tpu_custom_call.1} parent=1 // pred_check
      _
    $region3: #{tpu_custom_call.1} parent=1 // pred_check_branch
      %15 = sbr.rel (0) target = $region5
    $region4: #{tpu_custom_call.1} parent=1 // pred_region
      %s17 = ssub.s32 768, 768
      %18 = vsyncadd [#allocation3], %s17
      %s19 = sshll.u32 [#allocation2], 4
      %s20 = int_to_ptr.vmem [resolvable:$true] %s19
      %25 = dma.hbm_to_vmem [thread:$0]  %s0, 768, %s20, [#allocation3], 128, 128, 8
    $region5: #{tpu_custom_call.1} parent=1 // pred_fallthru
      _
    // Predicated region
    $region6: #{tpu_custom_call.1} parent=1 // pred_check
      _
    $region7: #{tpu_custom_call.1} parent=1 // pred_check_branch
      %27 = sbr.rel (0) target = $region9
    $region8: #{tpu_custom_call.1} parent=1 // pred_region
      %s29 = ssub.s32 64, 64
      %30 = vsyncadd [#allocation6], %s29
      %s32 = sshll.u32 [#allocation5], 4
      %s33 = int_to_ptr.vmem [resolvable:$true] %s32
      %35 = dma.hbm_to_vmem [thread:$0]  %s1, 64, %s33, [#allocation6]
    $region9: #{tpu_custom_call.1} parent=1 // pred_fallthru
      _
    // Predicated region
    $region10: #{tpu_custom_call.1} parent=1 // pred_check
      _
    $region11: #{tpu_custom_call.1} parent=1 // pred_check_branch
      %37 = sbr.rel (0) target = $region13
    $region12: #{tpu_custom_call.1} parent=1 // pred_region
      %s39 = ssub.s32 768, 768
      %40 = vsyncadd [#allocation6], %s39
      %s41 = sshll.u32 [#allocation7], 4
      %s42 = int_to_ptr.vmem [resolvable:$true] %s41
      %47 = dma.hbm_to_vmem [thread:$0]  %s2, 768, %s42, [#allocation6], 128, 128, 8
    $region13: #{tpu_custom_call.1} parent=1 // pred_fallthru
      _
    // Predicated region
    $region14: #{tpu_custom_call.1} parent=1 // pred_check
      _
    $region15: #{tpu_custom_call.1} parent=1 // pred_check_branch
      %49 = sbr.rel (0) target = $region17
    $region16: #{tpu_custom_call.1} parent=1 // pred_region
      %50 = dma.done [#allocation3], 768
    $region17: #{tpu_custom_call.1} parent=1 // pred_fallthru
      _
    // Predicated region
    $region18: #{tpu_custom_call.1} parent=1 // pred_check
      _
    $region19: #{tpu_custom_call.1} parent=1 // pred_check_branch
      %52 = sbr.rel (0) target = $region21
    $region20: #{tpu_custom_call.1} parent=1 // pred_region
      %53 = dma.done [#allocation6], 64
    $region21: #{tpu_custom_call.1} parent=1 // pred_fallthru
      _
    // Predicated region
    $region22: #{tpu_custom_call.1} parent=1 // pred_check
      _
    $region23: #{tpu_custom_call.1} parent=1 // pred_check_branch
      %55 = sbr.rel (0) target = $region25
    $region24: #{tpu_custom_call.1} parent=1 // pred_region
      %56 = dma.done [#allocation6], 768
    $region25: #{tpu_custom_call.1} parent=1 // pred_fallthru
      _
    %v57 = vld [vmem:[#allocation2] sm:$0xff]
    %v58 = vld [vmem:[#allocation2 + $0x8] sm:$0xff]
    %v59 = vld [vmem:[#allocation2 + $0x10] sm:$0xff]
    %v60 = vld [vmem:[#allocation2 + $0x18] sm:$0xff]
    %v61 = vld [vmem:[#allocation2 + $0x20] sm:$0xff]
    %v62 = vld [vmem:[#allocation2 + $0x28] sm:$0x3]
    %v63 = vld [vmem:[#allocation5] sm:$0x7]
    %vm64 = vcmask 654336
    %v66 = vsel %vm64, %v63, 0
    %v69 = vsel %vm64, %v57, 0
    %v72 = vsel %vm64, %v58, 0
    %v75 = vsel %vm64, %v59, 0
    %v78 = vsel %vm64, %v60, 0
    %v81 = vsel %vm64, %v61, 0
    %v84 = vsel %vm64, %v62, 0
    %86 = vmatprep.subr.mxu0 0.0
    %87 = vmatpush1.xpose.msra.mxu0 %v69
    %88 = vmatprep.subr.mxu0 0.0
    %89 = vmatpush1.xpose.msra.mxu0 %v72
    %90 = vmatprep.subr.mxu0 0.0
    %91 = vmatpush1.xpose.msra.mxu0 %v75
    %92 = vmatprep.subr.mxu0 0.0
    %93 = vmatpush1.xpose.msra.mxu0 %v78
    %94 = vmatprep.subr.mxu0 0.0
    %95 = vmatpush1.xpose.msra.mxu0 %v81
    %96 = vmatprep.subr.mxu0 0.0
    %97 = vmatpush1.xpose.msra.mxu0 %v84
    %98 = vmatprep.subr.mxu0 0.0
    %99 = vmatpush1.xpose.msra.mxu0 0.0
    %100 = vmatprep.subr.mxu0 0.0
    %101 = vmatpush1.xpose.msra.mxu0 0.0
    %102 = vmatprep.subr.mxu0 0.0
    %103 = vmatpush1.xpose.msra.mxu0 0.0
    %104 = vmatprep.subr.mxu0 0.0
    %105 = vmatpush1.xpose.msra.mxu0 0.0
    %106 = vmatprep.subr.mxu0 0.0
    %107 = vmatpush1.xpose.msra.mxu0 0.0
    %108 = vmatprep.subr.mxu0 0.0
    %109 = vmatpush1.xpose.msra.mxu0 0.0
    %110 = vmatprep.subr.mxu0 0.0
    %111 = vmatpush1.xpose.msra.mxu0 0.0
    %112 = vmatprep.subr.mxu0 0.0
    %113 = vmatpush1.xpose.msra.mxu0 0.0
    %114 = vmatprep.subr.mxu0 0.0
    %115 = vmatpush1.xpose.msra.mxu0 0.0
    %116 = vmatprep.subr.mxu0 0.0
    %117 = vmatpush1.xpose.msra.mxu0 0.0
    %118 = vmatprep.subr.mxu0 0.0
    %119 = vmatpush1.xpose.msra.mxu0 0.0
    %120 = vmatprep.subr.mxu0 0.0
    %121 = vmatpush1.xpose.msra.mxu0 0.0
    %122 = vmatprep.subr.mxu0 0.0
    %123 = vmatpush1.xpose.msra.mxu0 0.0
    %124 = vmatprep.subr.mxu0 0.0
    %125 = vmatpush1.xpose.msra.mxu0 0.0
    %126 = vmatprep.subr.mxu0 0.0
    %127 = vmatpush1.xpose.msra.mxu0 0.0
    %128 = vmatprep.subr.mxu0 0.0
    %129 = vmatpush1.xpose.msra.mxu0 0.0
    %130 = vmatprep.subr.mxu0 0.0
    %131 = vmatpush1.xpose.msra.mxu0 0.0
    %132 = vmatprep.subr.mxu0 0.0
    %133 = vmatpush1.xpose.msra.mxu0 0.0
    %134 = vmatprep.subr.mxu0 0.0
    %135 = vmatpush1.xpose.msra.mxu0 0.0
    %136 = vmatprep.subr.mxu0 0.0
    %137 = vmatpush1.xpose.msra.mxu0 0.0
    %138 = vmatprep.subr.mxu0 0.0
    %139 = vmatpush1.xpose.msra.mxu0 0.0
    %140 = vmatprep.subr.mxu0 0.0
    %141 = vmatpush1.xpose.msra.mxu0 0.0
    %142 = vmatprep.subr.mxu0 0.0
    %143 = vmatpush1.xpose.msra.mxu0 0.0
    %144 = vmatprep.subr.mxu0 0.0
    %145 = vmatpush1.xpose.msra.mxu0 0.0
    %146 = vmatprep.subr.mxu0 0.0
    %147 = vmatpush1.xpose.msra.mxu0 0.0
    %148 = vmatprep.subr.mxu0 0.0
    %149 = vmatpush1.xpose.msra.mxu0 0.0
    %150 = vmatprep.mubr.f32.mxu0 0.0
    %151 = vmatmul.mubr.f32.gmra.mrb[0].mxu0 %v66
    %v152 = vpop.f32.mrb[0].mxu0
    %v153 = vadd.f32 0.0, %v152
    %v154 = vpop.f32.mrb[0].mxu0
    %155 = vdwg.mxu0
    %vm156 = vcmask 337920
    %157 = vst.msk [vmem:[#allocation8] sm:$0x7] %vm156, %v153
    %v158 = vld [vmem:[#allocation7] sm:$0xff]
    %v159 = vld [vmem:[#allocation7 + $0x8] sm:$0xff]
    %v160 = vld [vmem:[#allocation7 + $0x10] sm:$0xff]
    %v161 = vld [vmem:[#allocation7 + $0x18] sm:$0xff]
    %v162 = vld [vmem:[#allocation7 + $0x20] sm:$0xff]
    %v163 = vld [vmem:[#allocation7 + $0x28] sm:$0x3]
    %v165 = vsel %vm64, %v158, 0
    %v168 = vsel %vm64, %v159, 0
    %v171 = vsel %vm64, %v160, 0
    %v174 = vsel %vm64, %v161, 0
    %v177 = vsel %vm64, %v162, 0
    %v180 = vsel %vm64, %v163, 0
    %182 = vmatprep.subr.mxu0 0.0
    %183 = vmatpush1.xpose.msra.mxu0 %v69
    %184 = vmatprep.subr.mxu0 0.0
    %185 = vmatpush1.xpose.msra.mxu0 %v72
    %186 = vmatprep.subr.mxu0 0.0
    %187 = vmatpush1.xpose.msra.mxu0 %v75
    %188 = vmatprep.subr.mxu0 0.0
    %189 = vmatpush1.xpose.msra.mxu0 %v78
    %190 = vmatprep.subr.mxu0 0.0
    %191 = vmatpush1.xpose.msra.mxu0 %v81
    %192 = vmatprep.subr.mxu0 0.0
    %193 = vmatpush1.xpose.msra.mxu0 %v84
    %194 = vmatprep.subr.mxu0 0.0
    %195 = vmatpush1.xpose.msra.mxu0 0.0
    %196 = vmatprep.subr.mxu0 0.0
    %197 = vmatpush1.xpose.msra.mxu0 0.0
    %198 = vmatprep.subr.mxu0 0.0
    %199 = vmatpush1.xpose.msra.mxu0 0.0
    %200 = vmatprep.subr.mxu0 0.0
    %201 = vmatpush1.xpose.msra.mxu0 0.0
    %202 = vmatprep.subr.mxu0 0.0
    %203 = vmatpush1.xpose.msra.mxu0 0.0
    %204 = vmatprep.subr.mxu0 0.0
    %205 = vmatpush1.xpose.msra.mxu0 0.0
    %206 = vmatprep.subr.mxu0 0.0
    %207 = vmatpush1.xpose.msra.mxu0 0.0
    %208 = vmatprep.subr.mxu0 0.0
    %209 = vmatpush1.xpose.msra.mxu0 0.0
    %210 = vmatprep.subr.mxu0 0.0
    %211 = vmatpush1.xpose.msra.mxu0 0.0
    %212 = vmatprep.subr.mxu0 0.0
    %213 = vmatpush1.xpose.msra.mxu0 0.0
    %214 = vmatprep.subr.mxu0 0.0
    %215 = vmatpush1.xpose.msra.mxu0 0.0
    %216 = vmatprep.subr.mxu0 0.0
    %217 = vmatpush1.xpose.msra.mxu0 0.0
    %218 = vmatprep.subr.mxu0 0.0
    %219 = vmatpush1.xpose.msra.mxu0 0.0
    %220 = vmatprep.subr.mxu0 0.0
    %221 = vmatpush1.xpose.msra.mxu0 0.0
    %222 = vmatprep.subr.mxu0 0.0
    %223 = vmatpush1.xpose.msra.mxu0 0.0
    %224 = vmatprep.subr.mxu0 0.0
    %225 = vmatpush1.xpose.msra.mxu0 0.0
    %226 = vmatprep.subr.mxu0 0.0
    %227 = vmatpush1.xpose.msra.mxu0 0.0
    %228 = vmatprep.subr.mxu0 0.0
    %229 = vmatpush1.xpose.msra.mxu0 0.0
    %230 = vmatprep.subr.mxu0 0.0
    %231 = vmatpush1.xpose.msra.mxu0 0.0
    %232 = vmatprep.subr.mxu0 0.0
    %233 = vmatpush1.xpose.msra.mxu0 0.0
    %234 = vmatprep.subr.mxu0 0.0
    %235 = vmatpush1.xpose.msra.mxu0 0.0
    %236 = vmatprep.subr.mxu0 0.0
    %237 = vmatpush1.xpose.msra.mxu0 0.0
    %238 = vmatprep.subr.mxu0 0.0
    %239 = vmatpush1.xpose.msra.mxu0 0.0
    %240 = vmatprep.subr.mxu0 0.0
    %241 = vmatpush1.xpose.msra.mxu0 0.0
    %242 = vmatprep.subr.mxu0 0.0
    %243 = vmatpush1.xpose.msra.mxu0 0.0
    %244 = vmatprep.subr.mxu0 0.0
    %245 = vmatpush1.xpose.msra.mxu0 0.0
    %246 = vmatprep.mubr.f32.mxu0 0.0
    %247 = vmatmul.mubr.f32.gmra.mrb[0].mxu0 %v165
    %v248 = vpop.f32.mrb[0].mxu0
    %v249 = vadd.f32 0.0, %v248
    %v250 = vpop.f32.mrb[0].mxu0
    %251 = vmatprep.mubr.f32.mxu0 0.0
    %252 = vmatmul.mubr.f32.gmra.mrb[0].mxu0 %v168
    %v253 = vpop.f32.mrb[0].mxu0
    %v254 = vadd.f32 0.0, %v253
    %v255 = vpop.f32.mrb[0].mxu0
    %256 = vmatprep.mubr.f32.mxu0 0.0
    %257 = vmatmul.mubr.f32.gmra.mrb[0].mxu0 %v171
    %v258 = vpop.f32.mrb[0].mxu0
    %v259 = vadd.f32 0.0, %v258
    %v260 = vpop.f32.mrb[0].mxu0
    %261 = vmatprep.mubr.f32.mxu0 0.0
    %262 = vmatmul.mubr.f32.gmra.mrb[0].mxu0 %v174
    %v263 = vpop.f32.mrb[0].mxu0
    %v264 = vadd.f32 0.0, %v263
    %v265 = vpop.f32.mrb[0].mxu0
    %266 = vmatprep.mubr.f32.mxu0 0.0
    %267 = vmatmul.mubr.f32.gmra.mrb[0].mxu0 %v177
    %v268 = vpop.f32.mrb[0].mxu0
    %v269 = vadd.f32 0.0, %v268
    %v270 = vpop.f32.mrb[0].mxu0
    %271 = vmatprep.mubr.f32.mxu0 0.0
    %272 = vmatmul.mubr.f32.gmra.mrb[0].mxu0 %v180
    %v273 = vpop.f32.mrb[0].mxu0
    %v274 = vadd.f32 0.0, %v273
    %v275 = vpop.f32.mrb[0].mxu0
    %276 = vdwg.mxu0
    %vm277 = vcmask 343040
    %278 = vst.msk [vmem:[#allocation9] sm:$0xff] %vm277, %v249
    %279 = vst.msk [vmem:[#allocation9 + $0x8] sm:$0xff] %vm277, %v254
    %280 = vst.msk [vmem:[#allocation9 + $0x10] sm:$0xff] %vm277, %v259
    %281 = vst.msk [vmem:[#allocation9 + $0x18] sm:$0xff] %vm277, %v264
    %282 = vst.msk [vmem:[#allocation9 + $0x20] sm:$0xff] %vm277, %v269
    %vm283 = vcmask 336896
    %284 = vst.msk [vmem:[#allocation9 + $0x28] sm:$0x3] %vm283, %v274
    // Predicated region
    $region26: #{tpu_custom_call.1} parent=1 // pred_check
      _
    $region27: #{tpu_custom_call.1} parent=1 // pred_check_branch
      %286 = sbr.rel (0) target = $region29
    $region28: #{tpu_custom_call.1} parent=1 // pred_region
      %s288 = ssub.s32 64, 64
      %289 = vsyncadd [#allocation4], %s288
      %s291 = sshll.u32 [#allocation8], 4
      %s292 = int_to_ptr.vmem [resolvable:$true] %s291
      %294 = dma.vmem_to_hbm [thread:$0]  %s292, 64, %s3, [#allocation4]
    $region29: #{tpu_custom_call.1} parent=1 // pred_fallthru
      _
    // Predicated region
    $region30: #{tpu_custom_call.1} parent=1 // pred_check
      _
    $region31: #{tpu_custom_call.1} parent=1 // pred_check_branch
      %296 = sbr.rel (0) target = $region33
    $region32: #{tpu_custom_call.1} parent=1 // pred_region
      %s298 = ssub.s32 768, 768
      %299 = vsyncadd [#allocation10], %s298
      %s300 = sshll.u32 [#allocation9], 4
      %s301 = int_to_ptr.vmem [resolvable:$true] %s300
      %306 = dma.vmem_to_hbm [thread:$0]  %s301, 768, %s4, [#allocation10], 128, 128, 8
    $region33: #{tpu_custom_call.1} parent=1 // pred_fallthru
      _
    // Predicated region
    $region34: #{tpu_custom_call.1} parent=1 // pred_check
      _
    $region35: #{tpu_custom_call.1} parent=1 // pred_check_branch
      %308 = sbr.rel (0) target = $region37
    $region36: #{tpu_custom_call.1} parent=1 // pred_region
      %309 = dma.done [#allocation4], 64
    $region37: #{tpu_custom_call.1} parent=1 // pred_fallthru
      _
    // Predicated region
    $region38: #{tpu_custom_call.1} parent=1 // pred_check
      _
    $region39: #{tpu_custom_call.1} parent=1 // pred_check_branch
      %311 = sbr.rel (0) target = $region41
    $region40: #{tpu_custom_call.1} parent=1 // pred_region
      %312 = dma.done [#allocation10], 768
    $region41: #{tpu_custom_call.1} parent=1 // pred_fallthru
      _
    %313 = vsyncpa [#allocation3], 1
    %314 = vsyncpa [#allocation6], 1
    %315 = vsyncpa [#allocation4], 1
    %316 = vsyncpa [#allocation10], 1

</llo_original>
